<compile_context>
chip_gen: v7x
topology: tpu7x:2x2x1
jax: 0.10.0
libtpu: 0.0.40
codegen_flags: <defaults>
</compile_context>

<pallas_src>
import jax
import jax.numpy as jnp
from jax.experimental import pallas as pl
from jax.experimental.pallas import tpu as pltpu

D_IN = 128
D_HID = 64


def _round_up(x, m):
    return ((x + m - 1) // m) * m


def _head_kernel(x_ref, w1_ref, b1_ref, w2_ref, b2_ref, o_ref):
    # head_1: Linear(128 -> 64), f32 MXU matmul with f32 accumulation.
    x = x_ref[...].astype(jnp.float32)
    h = jnp.dot(x, w1_ref[...], preferred_element_type=jnp.float32)
    # Bias add + ReLU on the VPU in f32.
    h = jnp.maximum(h + b1_ref[...], 0.0)
    # dropout: identity (eval mode).
    # head_4: Linear(64 -> n_out) at the true output width; the narrow store is
    # bounds/lane-masked but tiny (n_out columns per row).
    y = jnp.dot(h, w2_ref[...], preferred_element_type=jnp.float32)
    o_ref[...] = (y + b2_ref[...]).astype(o_ref.dtype)


def prepare_params(w1, b1, w2, b2):
    """One-time parameter prep (do at module-init / weight-load time).

    w1: [128, 64], b1: [64], w2: [64, n_out], b2: [n_out]  (weights already
    stored (in, out), i.e. transposed relative to nn.Linear.weight).
    """
    return (w1.astype(jnp.float32),
            b1.reshape(1, D_HID).astype(jnp.float32),
            w2.astype(jnp.float32),
            b2.reshape(1, -1).astype(jnp.float32))


def ecg_amigos_head(x, params, *, block_m=1024):
    """Forward pass of EcgAmigosHead (eval mode).

    x: [B, 128]; params = prepare_params(w1, b1, w2, b2).
    Returns [B, n_out] in x's dtype.
    """
    w1, b1_2d, w2, b2_2d = params
    B = x.shape[0]
    n_out = w2.shape[1]
    out_dtype = x.dtype

    # Batch tiling: sublane-aligned tiles; ragged last block handled by Pallas
    # (writes are bounds-masked; no jnp.pad copy of x).
    tm = min(block_m, _round_up(B, 8))
    # v7x megacore: make sure large batches produce >= 2 grid steps so the
    # "parallel" axis can shard across both TensorCores.
    if B >= 1024 and pl.cdiv(B, tm) < 2:
        tm = _round_up(pl.cdiv(B, 2), 8)
    grid = (pl.cdiv(B, tm),)

    return pl.pallas_call(
        _head_kernel,
        out_shape=jax.ShapeDtypeStruct((B, n_out), out_dtype),
        grid_spec=pl.GridSpec(
            grid=grid,
            in_specs=[
                pl.BlockSpec((tm, D_IN), lambda i: (i, 0)),
                # Constant index_maps: weights/biases stay VMEM-resident
                # (no per-tile re-DMA).
                pl.BlockSpec((D_IN, D_HID), lambda i: (0, 0)),
                pl.BlockSpec((1, D_HID), lambda i: (0, 0)),
                pl.BlockSpec((D_HID, n_out), lambda i: (0, 0)),
                pl.BlockSpec((1, n_out), lambda i: (0, 0)),
            ],
            out_specs=pl.BlockSpec((tm, n_out), lambda i: (i, 0)),
        ),
        compiler_params=pltpu.CompilerParams(
            # Independent batch tiles -> shard across both v7x TensorCores.
            dimension_semantics=("parallel",),
        ),
    )(x, w1, b1_2d, w2, b2_2d)


def _init_linear(key, in_features, out_features):
    """PyTorch nn.Linear default init: U(-1/sqrt(in), 1/sqrt(in)).

    Weight stored pre-transposed to (in, out) for the kernel.
    """
    kw, kb = jax.random.split(key)
    bound = 1.0 / (in_features ** 0.5)
    w = jax.random.uniform(kw, (in_features, out_features), jnp.float32,
                           minval=-bound, maxval=bound)
    b = jax.random.uniform(kb, (out_features,), jnp.float32,
                           minval=-bound, maxval=bound)
    return w, b


def _reference(x, w1, b1, w2, b2):
    h = jnp.maximum(x.astype(jnp.float32) @ w1 + b1, 0.0)
    return h @ w2 + b2


if __name__ == "__main__":
    key = jax.random.PRNGKey(0)
    kx, k1, k2, kx2, kx3 = jax.random.split(key, 5)

    N_OUT = 1
    w1, b1 = _init_linear(k1, D_IN, D_HID)
    w2, b2 = _init_linear(k2, D_HID, N_OUT)
    params = prepare_params(w1, b1, w2, b2)

    # Case 1: small aligned batch.
    B = 8
    x = jax.random.normal(kx, (B, D_IN), jnp.float32)
    out = jax.block_until_ready(ecg_amigos_head(x, params))
    assert out.shape == (B, N_OUT)
    ref = _reference(x, w1, b1, w2, b2)
    assert jnp.allclose(out, ref, atol=1e-3, rtol=1e-3)

    # Case 2: batch not a multiple of the sublane size (single ragged tile).
    B2 = 37
    x2 = jax.random.normal(kx2, (B2, D_IN), jnp.float32)
    out2 = jax.block_until_ready(ecg_amigos_head(x2, params))
    assert out2.shape == (B2, N_OUT)
    ref2 = _reference(x2, w1, b1, w2, b2)
    assert jnp.allclose(out2, ref2, atol=1e-3, rtol=1e-3)

    # Case 3: multi-step grid with a ragged last block (no jnp.pad of x).
    B3 = 300
    x3 = jax.random.normal(kx3, (B3, D_IN), jnp.float32)
    out3 = jax.block_until_ready(ecg_amigos_head(x3, params, block_m=128))
    assert out3.shape == (B3, N_OUT)
    ref3 = _reference(x3, w1, b1, w2, b2)
    assert jnp.allclose(out3, ref3, atol=1e-3, rtol=1e-3)

    print("KERNEL_OK")
</pallas_src>

<mosaic_0001>
module attributes {stable_mosaic.version = 11 : i64} {
  func.func @_head_kernel(%arg0: i32, %arg1: memref<8x128xf32, #tpu.memory_space<vmem>>, %arg2: memref<128x64xf32, #tpu.memory_space<vmem>>, %arg3: memref<1x64xf32, #tpu.memory_space<vmem>>, %arg4: memref<64x1xf32, #tpu.memory_space<vmem>>, %arg5: memref<1x1xf32, #tpu.memory_space<vmem>>, %arg6: memref<8x1xf32, #tpu.memory_space<vmem>>) attributes {dimension_semantics = [#tpu.dimension_semantics<parallel>], iteration_bounds = array<i64: 1>, scalar_prefetch = 0 : i64, scratch_operands = 0 : i64, tpu.core_type = #tpu.core_type<tc>, window_params = [{transform_indices = @transform_0, window_bounds = array<i64: 8, 128>}, {pipeline_mode = #tpu.pipeline_mode<synchronous>, transform_indices = @transform_1, window_bounds = array<i64: 128, 64>}, {pipeline_mode = #tpu.pipeline_mode<synchronous>, transform_indices = @transform_2, window_bounds = array<i64: 1, 64>}, {pipeline_mode = #tpu.pipeline_mode<synchronous>, transform_indices = @transform_3, window_bounds = array<i64: 64, 1>}, {pipeline_mode = #tpu.pipeline_mode<synchronous>, transform_indices = @transform_4, window_bounds = array<i64: 1, 1>}, {transform_indices = @transform_5, window_bounds = array<i64: 8, 1>}]} {
    %c0 = arith.constant 0 : index
    %c0_0 = arith.constant 0 : index
    %0 = vector.load %arg1[%c0, %c0_0] : memref<8x128xf32, #tpu.memory_space<vmem>>, vector<8x128xf32>
    %c0_1 = arith.constant 0 : index
    %c0_2 = arith.constant 0 : index
    %1 = vector.load %arg2[%c0_1, %c0_2] : memref<128x64xf32, #tpu.memory_space<vmem>>, vector<128x64xf32>
    %cst = arith.constant dense<0.000000e+00> : vector<8x64xf32>
    %2 = tpu.matmul %0, %1, %cst {dimension_numbers = #tpu.dot_dimension_numbers<[1], [0], [0], [1], [0, 0, 1, 1], [], []>} : vector<8x128xf32>, vector<128x64xf32>, vector<8x64xf32> -> vector<8x64xf32>
    %c0_3 = arith.constant 0 : index
    %c0_4 = arith.constant 0 : index
    %3 = vector.load %arg3[%c0_3, %c0_4] : memref<1x64xf32, #tpu.memory_space<vmem>>, vector<1x64xf32>
    %4 = vector.broadcast %3 : vector<1x64xf32> to vector<8x64xf32>
    %5 = arith.addf %2, %4 : vector<8x64xf32>
    %cst_5 = arith.constant 0.000000e+00 : f32
    %6 = vector.broadcast %cst_5 : f32 to vector<8x64xf32>
    %7 = arith.maximumf %5, %6 : vector<8x64xf32>
    %c0_6 = arith.constant 0 : index
    %c0_7 = arith.constant 0 : index
    %8 = vector.load %arg4[%c0_6, %c0_7] : memref<64x1xf32, #tpu.memory_space<vmem>>, vector<64x1xf32>
    %cst_8 = arith.constant dense<0.000000e+00> : vector<8x1xf32>
    %9 = tpu.matmul %7, %8, %cst_8 {dimension_numbers = #tpu.dot_dimension_numbers<[1], [0], [0], [1], [0, 0, 1, 1], [], []>} : vector<8x64xf32>, vector<64x1xf32>, vector<8x1xf32> -> vector<8x1xf32>
    %c0_9 = arith.constant 0 : index
    %c0_10 = arith.constant 0 : index
    %10 = vector.load %arg5[%c0_9, %c0_10] : memref<1x1xf32, #tpu.memory_space<vmem>>, vector<1x1xf32>
    %11 = vector.broadcast %10 : vector<1x1xf32> to vector<8x1xf32>
    %12 = arith.addf %9, %11 : vector<8x1xf32>
    %c0_11 = arith.constant 0 : index
    %c0_12 = arith.constant 0 : index
    %13 = vector.load %arg6[%c0_11, %c0_12] : memref<8x1xf32, #tpu.memory_space<vmem>>, vector<8x1xf32>
    tpu.vector_store %arg6[%c0_11, %c0_12], %12 {strides = array<i32>} : memref<8x1xf32, #tpu.memory_space<vmem>>, vector<8x1xf32>,
    return
  }
  func.func @transform_0(%arg0: i32) -> (i32, i32) {
    %c0_i32 = arith.constant 0 : i32
    %c0_i32_0 = arith.constant 0 : i32
    return %arg0, %c0_i32 : i32, i32
  }
  func.func @transform_1(%arg0: i32) -> (i32, i32) {
    %c0_i32 = arith.constant 0 : i32
    %c0_i32_0 = arith.constant 0 : i32
    %c0_i32_1 = arith.constant 0 : i32
    return %c0_i32, %c0_i32_0 : i32, i32
  }
  func.func @transform_2(%arg0: i32) -> (i32, i32) {
    %c0_i32 = arith.constant 0 : i32
    %c0_i32_0 = arith.constant 0 : i32
    %c0_i32_1 = arith.constant 0 : i32
    return %c0_i32, %c0_i32_0 : i32, i32
  }
  func.func @transform_3(%arg0: i32) -> (i32, i32) {
    %c0_i32 = arith.constant 0 : i32
    %c0_i32_0 = arith.constant 0 : i32
    %c0_i32_1 = arith.constant 0 : i32
    return %c0_i32, %c0_i32_0 : i32, i32
  }
  func.func @transform_4(%arg0: i32) -> (i32, i32) {
    %c0_i32 = arith.constant 0 : i32
    %c0_i32_0 = arith.constant 0 : i32
    %c0_i32_1 = arith.constant 0 : i32
    return %c0_i32, %c0_i32_0 : i32, i32
  }
  func.func @transform_5(%arg0: i32) -> (i32, i32) {
    %c0_i32 = arith.constant 0 : i32
    %c0_i32_0 = arith.constant 0 : i32
    return %arg0, %c0_i32 : i32, i32
  }
}

</mosaic_0001>

<llo_original>
// kernel: tpu_custom_call.1
$region0: #{tpu_custom_call.1}
  #allocation0 [shape = 'u32[]', space=smem, size = 0x4, offset = 0x4, fixed_abs, tag = 'smem constant byte address 0x4 - core index']
  #allocation1 [shape = 'u32[144,128]{1,0:T(1,128)}', space=vmem, size = 0x12000, scoped, tag = 'internal scratch']
  #allocation2 [shape = 'f32[1,1]{1,0:T(1,128)S(1)}', space=vmem, size = 0x200, scoped, tag = 'scoped memory for tpu_custom_call.1']
  %s0 = inlined_call_operand.vmem [shape: f32[8,128], index: 0, kind: input, shape index: {}]
  %s1 = inlined_call_operand.vmem [shape: f32[128,64], index: 1, kind: input, shape index: {}]
  %s2 = inlined_call_operand.vmem [shape: f32[1,64], index: 2, kind: input, shape index: {}]
  %s3 = inlined_call_operand.vmem [shape: f32[64,1], index: 3, kind: input, shape index: {}]
  %s4 = inlined_call_operand.<no memory space> [shape: f32[1,1], index: 4, kind: input, shape index: {}]
  %s5 = inlined_call_operand.vmem [shape: f32[8,1], index: 5, kind: output, shape index: {}]
  %s6 = sld [smem:[#allocation0]]
  $region30: #{tpu_custom_call.1} parent=0
    _
  %s8 = ssub.s32 1, %s6
  %s9 = scalar_select 0, %s8, %s6
  %v10 = vstv %s4
  %11 = vst [vmem:[#allocation2] sm:$0x1] %v10
  // Predicated region
  $region2: #{tpu_custom_call.1} parent=0 // pred_check
    _
  $region3: #{tpu_custom_call.1} parent=0 // pred_check_branch
    %13 = sbr.rel (0) target = $region5
  $region4: #{tpu_custom_call.1} parent=0 // pred_region
    _
  $region5: #{tpu_custom_call.1} parent=0 // pred_fallthru
    _
  // Predicated region
  $region6: #{tpu_custom_call.1} parent=0 // pred_check
    _
  $region7: #{tpu_custom_call.1} parent=0 // pred_check_branch
    %15 = sbr.rel (0) target = $region9
  $region8: #{tpu_custom_call.1} parent=0 // pred_region
    _
  $region9: #{tpu_custom_call.1} parent=0 // pred_fallthru
    _
  // Predicated region
  $region10: #{tpu_custom_call.1} parent=0 // pred_check
    _
  $region11: #{tpu_custom_call.1} parent=0 // pred_check_branch
    %17 = sbr.rel (0) target = $region13
  $region12: #{tpu_custom_call.1} parent=0 // pred_region
    _
  $region13: #{tpu_custom_call.1} parent=0 // pred_fallthru
    _
  // Predicated region
  $region14: #{tpu_custom_call.1} parent=0 // pred_check
    _
  $region15: #{tpu_custom_call.1} parent=0 // pred_check_branch
    %19 = sbr.rel (0) target = $region17
  $region16: #{tpu_custom_call.1} parent=0 // pred_region
    _
  $region17: #{tpu_custom_call.1} parent=0 // pred_fallthru
    _
  // Predicated region
  $region18: #{tpu_custom_call.1} parent=0 // pred_check
    _
  $region19: #{tpu_custom_call.1} parent=0 // pred_check_branch
    %21 = sbr.rel (0) target = $region21
  $region20: #{tpu_custom_call.1} parent=0 // pred_region
    _
  $region21: #{tpu_custom_call.1} parent=0 // pred_fallthru
    _
  %v22 = vld [vmem:[%s0] sm:$0xff]
  %v23 = vld [vmem:[%s1] sm:$0xff]
  %v24 = vld [vmem:[%s1 + $0x8] sm:$0xff]
  %v25 = vld [vmem:[%s1 + $0x10] sm:$0xff]
  %v26 = vld [vmem:[%s1 + $0x18] sm:$0xff]
  %v27 = vld [vmem:[%s1 + $0x20] sm:$0xff]
  %v28 = vld [vmem:[%s1 + $0x28] sm:$0xff]
  %v29 = vld [vmem:[%s1 + $0x30] sm:$0xff]
  %v30 = vld [vmem:[%s1 + $0x38] sm:$0xff]
  %v31 = vld [vmem:[%s1 + $0x40] sm:$0xff]
  %v32 = vld [vmem:[%s1 + $0x48] sm:$0xff]
  %v33 = vld [vmem:[%s1 + $0x50] sm:$0xff]
  %v34 = vld [vmem:[%s1 + $0x58] sm:$0xff]
  %v35 = vld [vmem:[%s1 + $0x60] sm:$0xff]
  %v36 = vld [vmem:[%s1 + $0x68] sm:$0xff]
  %v37 = vld [vmem:[%s1 + $0x70] sm:$0xff]
  %v38 = vld [vmem:[%s1 + $0x78] sm:$0xff]
  %v39 = vld [vmem:[%s2] sm:$0x1]
  %v41 = vlaneseq
  %v42 = vshrl.u32 %v41, 7
  %v43 = vsub.s32 0, %v42
  %v44 = vrot.slane %v39, %v43
  %46 = vmatprep.subr.mxu0 0.0
  %47 = vmatpush1.msra.mxu0 %v23
  %48 = vmatprep.subr.mxu0 0.0
  %49 = vmatpush1.msra.mxu0 %v24
  %50 = vmatprep.subr.mxu0 0.0
  %51 = vmatpush1.msra.mxu0 %v25
  %52 = vmatprep.subr.mxu0 0.0
  %53 = vmatpush1.msra.mxu0 %v26
  %54 = vmatprep.subr.mxu0 0.0
  %55 = vmatpush1.msra.mxu0 %v27
  %56 = vmatprep.subr.mxu0 0.0
  %57 = vmatpush1.msra.mxu0 %v28
  %58 = vmatprep.subr.mxu0 0.0
  %59 = vmatpush1.msra.mxu0 %v29
  %60 = vmatprep.subr.mxu0 0.0
  %61 = vmatpush1.msra.mxu0 %v30
  %62 = vmatprep.subr.mxu0 0.0
  %63 = vmatpush1.msra.mxu0 %v31
  %64 = vmatprep.subr.mxu0 0.0
  %65 = vmatpush1.msra.mxu0 %v32
  %66 = vmatprep.subr.mxu0 0.0
  %67 = vmatpush1.msra.mxu0 %v33
  %68 = vmatprep.subr.mxu0 0.0
  %69 = vmatpush1.msra.mxu0 %v34
  %70 = vmatprep.subr.mxu0 0.0
  %71 = vmatpush1.msra.mxu0 %v35
  %72 = vmatprep.subr.mxu0 0.0
  %73 = vmatpush1.msra.mxu0 %v36
  %74 = vmatprep.subr.mxu0 0.0
  %75 = vmatpush1.msra.mxu0 %v37
  %76 = vmatprep.subr.mxu0 0.0
  %77 = vmatpush1.msra.mxu0 %v38
  %78 = vmatprep.subr.mxu0 0.0
  %79 = vmatpush1.msra.mxu0 0.0
  %80 = vmatprep.subr.mxu0 0.0
  %81 = vmatpush1.msra.mxu0 0.0
  %82 = vmatprep.subr.mxu0 0.0
  %83 = vmatpush1.msra.mxu0 0.0
  %84 = vmatprep.subr.mxu0 0.0
  %85 = vmatpush1.msra.mxu0 0.0
  %86 = vmatprep.subr.mxu0 0.0
  %87 = vmatpush1.msra.mxu0 0.0
  %88 = vmatprep.subr.mxu0 0.0
  %89 = vmatpush1.msra.mxu0 0.0
  %90 = vmatprep.subr.mxu0 0.0
  %91 = vmatpush1.msra.mxu0 0.0
  %92 = vmatprep.subr.mxu0 0.0
  %93 = vmatpush1.msra.mxu0 0.0
  %94 = vmatprep.subr.mxu0 0.0
  %95 = vmatpush1.msra.mxu0 0.0
  %96 = vmatprep.subr.mxu0 0.0
  %97 = vmatpush1.msra.mxu0 0.0
  %98 = vmatprep.subr.mxu0 0.0
  %99 = vmatpush1.msra.mxu0 0.0
  %100 = vmatprep.subr.mxu0 0.0
  %101 = vmatpush1.msra.mxu0 0.0
  %102 = vmatprep.subr.mxu0 0.0
  %103 = vmatpush1.msra.mxu0 0.0
  %104 = vmatprep.subr.mxu0 0.0
  %105 = vmatpush1.msra.mxu0 0.0
  %106 = vmatprep.subr.mxu0 0.0
  %107 = vmatpush1.msra.mxu0 0.0
  %108 = vmatprep.subr.mxu0 0.0
  %109 = vmatpush1.msra.mxu0 0.0
  %110 = vmatprep.mubr.f32.mxu0 0.0
  %111 = vmatmul.mubr.f32.gmra.mrb[0].mxu0 %v22
  %v112 = vpop.f32.mrb[0].mxu0
  %v113 = vadd.f32 %v44, %v112
  %v114 = vpop.f32.mrb[0].mxu0
  %115 = vdwg.mxu0
  %v116 = vmax.f32 %v113, 0.0
  %v117 = vld [vmem:[%s3] sm:$0xff]
  %v118 = vld [vmem:[%s3 + $0x8] sm:$0xff]
  %v119 = vld [vmem:[%s3 + $0x10] sm:$0xff]
  %v120 = vld [vmem:[%s3 + $0x18] sm:$0xff]
  %v121 = vld [vmem:[%s3 + $0x20] sm:$0xff]
  %v122 = vld [vmem:[%s3 + $0x28] sm:$0xff]
  %v123 = vld [vmem:[%s3 + $0x30] sm:$0xff]
  %v124 = vld [vmem:[%s3 + $0x38] sm:$0xff]
  %v125 = vld [vmem:[#allocation2] sm:$0x1]
  %v127 = vlaneseq
  %v128 = vshrl.u32 %v127, 7
  %v129 = vsub.s32 0, %v128
  %v130 = vrot.slane %v125, %v129
  %vm132 = vcmask 523264
  %v134 = vsel %vm132, %v116, 0
  %136 = vmatprep.subr.mxu0 0.0
  %137 = vmatpush1.msra.mxu0 %v117
  %138 = vmatprep.subr.mxu0 0.0
  %139 = vmatpush1.msra.mxu0 %v118
  %140 = vmatprep.subr.mxu0 0.0
  %141 = vmatpush1.msra.mxu0 %v119
  %142 = vmatprep.subr.mxu0 0.0
  %143 = vmatpush1.msra.mxu0 %v120
  %144 = vmatprep.subr.mxu0 0.0
  %145 = vmatpush1.msra.mxu0 %v121
  %146 = vmatprep.subr.mxu0 0.0
  %147 = vmatpush1.msra.mxu0 %v122
  %148 = vmatprep.subr.mxu0 0.0
  %149 = vmatpush1.msra.mxu0 %v123
  %150 = vmatprep.subr.mxu0 0.0
  %151 = vmatpush1.msra.mxu0 %v124
  %152 = vmatprep.subr.mxu0 0.0
  %153 = vmatpush1.msra.mxu0 0.0
  %154 = vmatprep.subr.mxu0 0.0
  %155 = vmatpush1.msra.mxu0 0.0
  %156 = vmatprep.subr.mxu0 0.0
  %157 = vmatpush1.msra.mxu0 0.0
  %158 = vmatprep.subr.mxu0 0.0
  %159 = vmatpush1.msra.mxu0 0.0
  %160 = vmatprep.subr.mxu0 0.0
  %161 = vmatpush1.msra.mxu0 0.0
  %162 = vmatprep.subr.mxu0 0.0
  %163 = vmatpush1.msra.mxu0 0.0
  %164 = vmatprep.subr.mxu0 0.0
  %165 = vmatpush1.msra.mxu0 0.0
  %166 = vmatprep.subr.mxu0 0.0
  %167 = vmatpush1.msra.mxu0 0.0
  %168 = vmatprep.subr.mxu0 0.0
  %169 = vmatpush1.msra.mxu0 0.0
  %170 = vmatprep.subr.mxu0 0.0
  %171 = vmatpush1.msra.mxu0 0.0
  %172 = vmatprep.subr.mxu0 0.0
  %173 = vmatpush1.msra.mxu0 0.0
  %174 = vmatprep.subr.mxu0 0.0
  %175 = vmatpush1.msra.mxu0 0.0
  %176 = vmatprep.subr.mxu0 0.0
  %177 = vmatpush1.msra.mxu0 0.0
  %178 = vmatprep.subr.mxu0 0.0
  %179 = vmatpush1.msra.mxu0 0.0
  %180 = vmatprep.subr.mxu0 0.0
  %181 = vmatpush1.msra.mxu0 0.0
  %182 = vmatprep.subr.mxu0 0.0
  %183 = vmatpush1.msra.mxu0 0.0
  %184 = vmatprep.subr.mxu0 0.0
  %185 = vmatpush1.msra.mxu0 0.0
  %186 = vmatprep.subr.mxu0 0.0
  %187 = vmatpush1.msra.mxu0 0.0
  %188 = vmatprep.subr.mxu0 0.0
  %189 = vmatpush1.msra.mxu0 0.0
  %190 = vmatprep.subr.mxu0 0.0
  %191 = vmatpush1.msra.mxu0 0.0
  %192 = vmatprep.subr.mxu0 0.0
  %193 = vmatpush1.msra.mxu0 0.0
  %194 = vmatprep.subr.mxu0 0.0
  %195 = vmatpush1.msra.mxu0 0.0
  %196 = vmatprep.subr.mxu0 0.0
  %197 = vmatpush1.msra.mxu0 0.0
  %198 = vmatprep.subr.mxu0 0.0
  %199 = vmatpush1.msra.mxu0 0.0
  %200 = vmatprep.mubr.f32.mxu0 0.0
  %201 = vmatmul.mubr.f32.gmra.mrb[0].mxu0 %v134
  %v202 = vpop.f32.mrb[0].mxu0
  %v203 = vadd.f32 %v130, %v202
  %v204 = vpop.f32.mrb[0].mxu0
  %205 = vdwg.mxu0
  %vm206 = vcmask 7168
  %207 = vst.msk [vmem:[%s5] sm:$0xff] %vm206, %v203
  // Predicated region
  $region22: #{tpu_custom_call.1} parent=0 // pred_check
    _
  $region23: #{tpu_custom_call.1} parent=0 // pred_check_branch
    %209 = sbr.rel (0) target = $region25
  $region24: #{tpu_custom_call.1} parent=0 // pred_region
    _
  $region25: #{tpu_custom_call.1} parent=0 // pred_fallthru
    _
  // Predicated region
  $region26: #{tpu_custom_call.1} parent=0 // pred_check
    _
  $region27: #{tpu_custom_call.1} parent=0 // pred_check_branch
    %211 = sbr.rel (0) target = $region29
  $region28: #{tpu_custom_call.1} parent=0 // pred_region
    _
  $region29: #{tpu_custom_call.1} parent=0 // pred_fallthru
    _

</llo_original>
